<compile_context>
chip_gen: v5e
topology: v5e:2x2
jax: 0.10.0
libtpu: 0.0.40
codegen_flags: <defaults>
</compile_context>

<pallas_src>
import functools

import jax
import jax.numpy as jnp
from jax import lax
from jax.experimental import pallas as pl
from jax.experimental.pallas import tpu as pltpu

LANES = 128
SUBLANES = 8


def _round_up(v, m):
    return ((v + m - 1) // m) * m


def _device_kind():
    try:
        return jax.devices()[0].device_kind.lower()
    except Exception:
        return ""


def _vmem_capacity_bytes():
    """Best-effort physical VMEM capacity; conservative fallback."""
    try:
        return int(pltpu.get_tpu_info().vmem_capacity_bytes)
    except Exception:
        kind = _device_kind()
        if any(t in kind for t in ("v4", "v5", "v6")):
            return 128 << 20
        return 64 << 20           # safe for v7x / unknown


def _num_tensorcores():
    kind = _device_kind()
    if "7" in kind or "v4" in kind:
        return 2
    return 1


def _has_bf16_vector_units():
    kind = _device_kind()
    if not kind:
        return False              # unknown -> be conservative (v5e has no bf16 VPU/EUP)
    return not any(t in kind for t in ("v2", "v3", "v4", "v5"))


def mlp_kernel(*refs, n_extra_hidden, compute_dtype, bf16_act):
    """One batch tile of the full MLP forward pass.

    refs (n_extra_hidden > 0):
      x (TB,K), w1 (K,H), b1 (1,H), wh (n,H,H), bh (n,1,H), wf (H,O), bf (1,O), out (TB,O)
    refs (n_extra_hidden == 0):
      x, w1, b1, wf, bf, out
    Weights/x are in compute_dtype; biases/accumulation/output are f32.
    """
    if n_extra_hidden > 0:
        x_ref, w1_ref, b1_ref, wh_ref, bh_ref, wf_ref, bf_ref, out_ref = refs
    else:
        x_ref, w1_ref, b1_ref, wf_ref, bf_ref, out_ref = refs
        wh_ref = bh_ref = None

    def activate(acc_f32, bias_f32):
        z = acc_f32 + bias_f32                      # f32
        if bf16_act:
            # bf16 tanh on the EUP (v6e/v7x): ~2x transcendental throughput,
            # output feeds the next MXU matmul directly (no extra cast).
            return jnp.tanh(z.astype(jnp.bfloat16))
        return jnp.tanh(z).astype(compute_dtype)

    # Linear_layer_1 + Tanh_layer_1 (MXU matmul, f32 accumulation, EUP tanh).
    h = activate(
        jnp.dot(x_ref[...], w1_ref[...], preferred_element_type=jnp.float32),
        b1_ref[...])

    # Linear_layer_2..hidden_num + Tanh: fori_loop keeps one layer live at a
    # time (bounded live ranges, no unroll blow-up for large hidden_num).
    if n_extra_hidden > 0:
        def body(i, h):
            return activate(
                jnp.dot(h, wh_ref[i], preferred_element_type=jnp.float32),
                bh_ref[i])
        h = lax.fori_loop(0, n_extra_hidden, body, h)

    # Linear_layer_final (no activation); lane-dense f32 store.
    out_ref[...] = (
        jnp.dot(h, wf_ref[...], preferred_element_type=jnp.float32)
        + bf_ref[...]
    ).astype(out_ref.dtype)


def dnn3_forward(x, params, hidden_num, *, compute_dtype=jnp.bfloat16,
                 batch_tile=256, bf16_activations=None):
    """params = (w1, b1, wh, bh, wf, bf) with weights already (in, out)."""
    w1, b1, wh, bh, wf, bf = params
    B, K = x.shape
    H = w1.shape[1]
    O = wf.shape[1]
    n_extra = hidden_num - 1
    assert n_extra >= 0

    f32 = jnp.float32
    wdt = jnp.dtype(compute_dtype)
    is_bf16 = (wdt == jnp.bfloat16)

    # ---- pad to hardware-friendly shapes (128-lane feature dims) ----------
    K_pad = _round_up(K, LANES)
    H_pad = _round_up(H, LANES)
    O_pad = _round_up(O, LANES)

    row_align = 16 if is_bf16 else SUBLANES      # bf16 packs 2 rows / sublane
    B_pad = _round_up(B, row_align)

    # Batch tile: large enough to fill a 256-wide MXU and amortize per-step
    # overhead; split so n_grid >= number of TensorCores (v7x has 2).
    TB = min(_round_up(batch_tile, row_align), B_pad)
    cores = _num_tensorcores()
    if cores > 1 and B_pad // TB < cores and B_pad >= cores * row_align:
        TB = _round_up(pl.cdiv(B_pad, cores), row_align)
    B_pad = _round_up(B_pad, TB)
    n_grid = B_pad // TB

    if bf16_activations is None:
        bf16_activations = is_bf16 and H_pad <= 256 and _has_bf16_vector_units()
    bf16_act = bool(bf16_activations) and is_bf16

    # ---- padded operands ----------------------------------------------------
    def pad2(a, r, c, dt):
        a = a.astype(dt)
        return jnp.pad(a, ((0, r - a.shape[0]), (0, c - a.shape[1])))

    # x streamed in compute dtype: halves HBM->VMEM DMA bytes in bf16 mode and
    # removes the per-tile cast inside the kernel.
    x_p = jnp.pad(x.astype(wdt), ((0, B_pad - B), (0, K_pad - K)))
    w1_p = pad2(w1, K_pad, H_pad, wdt)
    b1_p = pad2(b1, 1, H_pad, f32)
    wf_p = pad2(wf, H_pad, O_pad, wdt)
    bf_p = pad2(bf, 1, O_pad, f32)

    args = [x_p, w1_p, b1_p]
    wh_bytes = bh_bytes = 0
    if n_extra > 0:
        wh_p = jnp.pad(wh.astype(wdt), ((0, 0), (0, H_pad - H), (0, H_pad - H)))
        bh_p = jnp.pad(bh.astype(f32), ((0, 0), (0, 0), (0, H_pad - H)))
        wh_bytes = wh_p.size * wdt.itemsize
        bh_bytes = bh_p.size * 4
        args += [wh_p, bh_p]
    args += [wf_p, bf_p]

    # ---- BlockSpecs: batch streamed, weights pinned -------------------------
    batch_map = lambda i: (i, 0)

    def build_specs(single_buffer_weights):
        def pinned(shape):
            if single_buffer_weights:
                # Constant index_map -> weights never change across grid steps;
                # single-buffering halves their VMEM footprint (key on v7x).
                return pl.BlockSpec(shape, lambda i: (0,) * len(shape),
                                    pipeline_mode=pl.Buffered(1))
            return pl.BlockSpec(shape, lambda i: (0,) * len(shape))

        in_specs = [pl.BlockSpec((TB, K_pad), batch_map),      # x (pipelined)
                    pinned((K_pad, H_pad)),                    # w1
                    pinned((1, H_pad))]                        # b1
        if n_extra > 0:
            in_specs += [pinned((n_extra, H_pad, H_pad)),      # wh
                         pinned((n_extra, 1, H_pad))]          # bh
        in_specs += [pinned((H_pad, O_pad)),                   # wf
                     pinned((1, O_pad))]                       # bf
        out_specs = pl.BlockSpec((TB, O_pad), batch_map)
        return in_specs, out_specs

    # ---- cost estimate + VMEM budget ----------------------------------------
    w_bytes = (w1_p.size + wf_p.size) * wdt.itemsize + wh_bytes
    b_bytes = (b1_p.size + bf_p.size) * 4 + bh_bytes
    flops = 2 * B_pad * (K_pad * H_pad + n_extra * H_pad * H_pad + H_pad * O_pad)
    transcendentals = B_pad * H_pad * hidden_num
    bytes_accessed = int(x_p.size * x_p.dtype.itemsize + w_bytes + b_bytes
                         + B_pad * O_pad * 4)
    cost = pl.CostEstimate(flops=int(flops),
                           transcendentals=int(transcendentals),
                           bytes_accessed=bytes_accessed)

    vmem_cap = _vmem_capacity_bytes()

    def vmem_limit_for(single_buffer_weights):
        wbuf = 1 if single_buffer_weights else 2
        resident = wbuf * (w_bytes + b_bytes)                     # pinned weights
        streamed = 2 * TB * K_pad * x_p.dtype.itemsize \
                 + 2 * TB * O_pad * 4                             # double-buffered x/out
        act_scratch = 4 * TB * H_pad * 4                          # live activation headroom
        headroom = 4 << 20
        needed = resident + streamed + act_scratch + headroom
        cap = int(vmem_cap * 0.9) - (2 << 20)                     # never exceed physical VMEM
        return int(max(16 << 20, min(needed, cap)))

    kernel = functools.partial(mlp_kernel, n_extra_hidden=n_extra,
                               compute_dtype=wdt, bf16_act=bf16_act)

    def run(single_buffer_weights):
        in_specs, out_specs = build_specs(single_buffer_weights)
        return pl.pallas_call(
            kernel,
            out_shape=jax.ShapeDtypeStruct((B_pad, O_pad), jnp.float32),
            grid=(n_grid,),
            in_specs=in_specs,
            out_specs=out_specs,
            compiler_params=pltpu.CompilerParams(
                dimension_semantics=("parallel",),
                vmem_limit_bytes=vmem_limit_for(single_buffer_weights),
            ),
            cost_estimate=cost,
        )(*args)

    try:
        out_p = run(True)          # single-buffered pinned weights
    except Exception:
        out_p = run(False)         # fallback: default double-buffered pipelining

    return out_p[:B, :O].astype(x.dtype)


def init_params(key, input_size, hidden_size, output_size, hidden_num):
    """Deterministic synthetic init (nn.Linear shapes, weights pre-transposed)."""
    ks = jax.random.split(key, 6)
    scale = 0.1
    n_extra = max(hidden_num - 1, 0)
    w1 = scale * jax.random.normal(ks[0], (input_size, hidden_size), jnp.float32)
    b1 = scale * jax.random.normal(ks[1], (1, hidden_size), jnp.float32)
    wh = scale * jax.random.normal(ks[2], (n_extra, hidden_size, hidden_size), jnp.float32)
    bh = scale * jax.random.normal(ks[3], (n_extra, 1, hidden_size), jnp.float32)
    wf = scale * jax.random.normal(ks[4], (hidden_size, output_size), jnp.float32)
    bf = scale * jax.random.normal(ks[5], (1, output_size), jnp.float32)
    return (w1, b1, wh, bh, wf, bf)


def dnn3_reference(x, params, hidden_num):
    """Pure-JAX reference mirroring the PyTorch forward pass."""
    w1, b1, wh, bh, wf, bf = params
    h = jnp.tanh(x @ w1 + b1)
    for i in range(hidden_num - 1):
        h = jnp.tanh(h @ wh[i] + bh[i])
    return h @ wf + bf


if __name__ == "__main__":
    # Small shapes consistent with the module's forward.
    batch, input_size, hidden_size, output_size, hidden_num = 8, 16, 32, 4, 3

    key = jax.random.PRNGKey(0)
    kx, kp = jax.random.split(key)
    x = jax.random.normal(kx, (batch, input_size), jnp.float32)
    params = init_params(kp, input_size, hidden_size, output_size, hidden_num)
    ref = dnn3_reference(x, params, hidden_num)

    # Default path: bf16 MXU operands, f32 accumulation (looser tolerance).
    out_bf16 = jax.block_until_ready(dnn3_forward(x, params, hidden_num))
    assert out_bf16.shape == (batch, output_size)
    assert jnp.allclose(out_bf16, ref, atol=5e-2, rtol=5e-2)

    # f32 weights: tight tolerance vs. the reference.
    out_f32 = jax.block_until_ready(
        dnn3_forward(x, params, hidden_num, compute_dtype=jnp.float32))
    assert jnp.allclose(out_f32, ref, atol=1e-4, rtol=1e-4)

    # Degenerate hidden_num == 1 (no extra hidden layers, no wh/bh passed).
    params1 = init_params(kp, input_size, hidden_size, output_size, 1)
    out1 = jax.block_until_ready(
        dnn3_forward(x, params1, 1, compute_dtype=jnp.float32))
    assert jnp.allclose(out1, dnn3_reference(x, params1, 1), atol=1e-4, rtol=1e-4)

    print("KERNEL_OK")
</pallas_src>

<mosaic_0001>
module attributes {stable_mosaic.version = 11 : i64} {
  func.func @mlp_kernel(%arg0: i32, %arg1: memref<16x128xbf16, #tpu.memory_space<vmem>>, %arg2: memref<128x128xbf16, #tpu.memory_space<vmem>>, %arg3: memref<1x128xf32, #tpu.memory_space<vmem>>, %arg4: memref<2x128x128xbf16, #tpu.memory_space<vmem>>, %arg5: memref<2x1x128xf32, #tpu.memory_space<vmem>>, %arg6: memref<128x128xbf16, #tpu.memory_space<vmem>>, %arg7: memref<1x128xf32, #tpu.memory_space<vmem>>, %arg8: memref<16x128xf32, #tpu.memory_space<vmem>>) attributes {dimension_semantics = [#tpu.dimension_semantics<parallel>], iteration_bounds = array<i64: 1>, scalar_prefetch = 0 : i64, scratch_operands = 0 : i64, tpu.core_type = #tpu.core_type<tc>, window_params = [{transform_indices = @transform_0, window_bounds = array<i64: 16, 128>}, {pipeline_mode = #tpu.pipeline_mode<synchronous>, transform_indices = @transform_1, window_bounds = array<i64: 128, 128>}, {pipeline_mode = #tpu.pipeline_mode<synchronous>, transform_indices = @transform_2, window_bounds = array<i64: 1, 128>}, {pipeline_mode = #tpu.pipeline_mode<synchronous>, transform_indices = @transform_3, window_bounds = array<i64: 2, 128, 128>}, {pipeline_mode = #tpu.pipeline_mode<synchronous>, transform_indices = @transform_4, window_bounds = array<i64: 2, 1, 128>}, {pipeline_mode = #tpu.pipeline_mode<synchronous>, transform_indices = @transform_5, window_bounds = array<i64: 128, 128>}, {pipeline_mode = #tpu.pipeline_mode<synchronous>, transform_indices = @transform_6, window_bounds = array<i64: 1, 128>}, {transform_indices = @transform_7, window_bounds = array<i64: 16, 128>}]} {
    %c0 = arith.constant 0 : index
    %c0_0 = arith.constant 0 : index
    %0 = vector.load %arg1[%c0, %c0_0] : memref<16x128xbf16, #tpu.memory_space<vmem>>, vector<16x128xbf16>
    %c0_1 = arith.constant 0 : index
    %c0_2 = arith.constant 0 : index
    %1 = vector.load %arg2[%c0_1, %c0_2] : memref<128x128xbf16, #tpu.memory_space<vmem>>, vector<128x128xbf16>
    %cst = arith.constant dense<0.000000e+00> : vector<16x128xf32>
    %2 = tpu.matmul %0, %1, %cst {dimension_numbers = #tpu.dot_dimension_numbers<[1], [0], [0], [1], [0, 0, 1, 1], [], []>} : vector<16x128xbf16>, vector<128x128xbf16>, vector<16x128xf32> -> vector<16x128xf32>
    %c0_3 = arith.constant 0 : index
    %c0_4 = arith.constant 0 : index
    %3 = vector.load %arg3[%c0_3, %c0_4] : memref<1x128xf32, #tpu.memory_space<vmem>>, vector<1x128xf32>
    %4 = vector.broadcast %3 : vector<1x128xf32> to vector<16x128xf32>
    %5 = arith.addf %2, %4 : vector<16x128xf32>
    %6 = arith.truncf %5 : vector<16x128xf32> to vector<16x128xbf16>
    %7 = math.tanh %6 : vector<16x128xbf16>
    %c0_i32 = arith.constant 0 : i32
    %c2_i32 = arith.constant 2 : i32
    %8 = arith.addi %c0_i32, %c2_i32 : i32
    %c1_i32 = arith.constant 1 : i32
    %9 = scf.for %arg9 = %c0_i32 to %8 step %c1_i32 iter_args(%arg10 = %7) -> (vector<16x128xbf16>)  : i32 {
      %16 = arith.index_cast %arg9 : i32 to index
      %c0_13 = arith.constant 0 : index
      %c0_14 = arith.constant 0 : index
      %17 = vector.load %arg4[%16, %c0_13, %c0_14] : memref<2x128x128xbf16, #tpu.memory_space<vmem>>, vector<1x128x128xbf16>
      %18 = vector.shape_cast %17 : vector<1x128x128xbf16> to vector<128x128xbf16>
      %cst_15 = arith.constant dense<0.000000e+00> : vector<16x128xf32>
      %19 = tpu.matmul %arg10, %18, %cst_15 {dimension_numbers = #tpu.dot_dimension_numbers<[1], [0], [0], [1], [0, 0, 1, 1], [], []>} : vector<16x128xbf16>, vector<128x128xbf16>, vector<16x128xf32> -> vector<16x128xf32>
      %20 = arith.index_cast %arg9 : i32 to index
      %c0_16 = arith.constant 0 : index
      %c0_17 = arith.constant 0 : index
      %21 = vector.load %arg5[%20, %c0_16, %c0_17] : memref<2x1x128xf32, #tpu.memory_space<vmem>>, vector<1x1x128xf32>
      %22 = vector.shape_cast %21 : vector<1x1x128xf32> to vector<1x128xf32>
      %23 = vector.broadcast %22 : vector<1x128xf32> to vector<16x128xf32>
      %24 = arith.addf %19, %23 : vector<16x128xf32>
      %25 = arith.truncf %24 : vector<16x128xf32> to vector<16x128xbf16>
      %26 = math.tanh %25 : vector<16x128xbf16>
      scf.yield %26 : vector<16x128xbf16>
    }
    %c2_i32_5 = arith.constant 2 : i32
    %c0_6 = arith.constant 0 : index
    %c0_7 = arith.constant 0 : index
    %10 = vector.load %arg6[%c0_6, %c0_7] : memref<128x128xbf16, #tpu.memory_space<vmem>>, vector<128x128xbf16>
    %cst_8 = arith.constant dense<0.000000e+00> : vector<16x128xf32>
    %11 = tpu.matmul %9, %10, %cst_8 {dimension_numbers = #tpu.dot_dimension_numbers<[1], [0], [0], [1], [0, 0, 1, 1], [], []>} : vector<16x128xbf16>, vector<128x128xbf16>, vector<16x128xf32> -> vector<16x128xf32>
    %c0_9 = arith.constant 0 : index
    %c0_10 = arith.constant 0 : index
    %12 = vector.load %arg7[%c0_9, %c0_10] : memref<1x128xf32, #tpu.memory_space<vmem>>, vector<1x128xf32>
    %13 = vector.broadcast %12 : vector<1x128xf32> to vector<16x128xf32>
    %14 = arith.addf %11, %13 : vector<16x128xf32>
    %c0_11 = arith.constant 0 : index
    %c0_12 = arith.constant 0 : index
    %15 = vector.load %arg8[%c0_11, %c0_12] : memref<16x128xf32, #tpu.memory_space<vmem>>, vector<16x128xf32>
    tpu.vector_store %arg8[%c0_11, %c0_12], %14 {strides = array<i32>} : memref<16x128xf32, #tpu.memory_space<vmem>>, vector<16x128xf32>,
    return
  }
  func.func @transform_0(%arg0: i32) -> (i32, i32) {
    %c0_i32 = arith.constant 0 : i32
    %c0_i32_0 = arith.constant 0 : i32
    return %arg0, %c0_i32 : i32, i32
  }
  func.func @transform_1(%arg0: i32) -> (i32, i32) {
    %c0_i32 = arith.constant 0 : i32
    %c0_i32_0 = arith.constant 0 : i32
    %c0_i32_1 = arith.constant 0 : i32
    return %c0_i32, %c0_i32_0 : i32, i32
  }
  func.func @transform_2(%arg0: i32) -> (i32, i32) {
    %c0_i32 = arith.constant 0 : i32
    %c0_i32_0 = arith.constant 0 : i32
    %c0_i32_1 = arith.constant 0 : i32
    return %c0_i32, %c0_i32_0 : i32, i32
  }
  func.func @transform_3(%arg0: i32) -> (i32, i32, i32) {
    %c0_i32 = arith.constant 0 : i32
    %c0_i32_0 = arith.constant 0 : i32
    %c0_i32_1 = arith.constant 0 : i32
    %c0_i32_2 = arith.constant 0 : i32
    return %c0_i32, %c0_i32_0, %c0_i32_1 : i32, i32, i32
  }
  func.func @transform_4(%arg0: i32) -> (i32, i32, i32) {
    %c0_i32 = arith.constant 0 : i32
    %c0_i32_0 = arith.constant 0 : i32
    %c0_i32_1 = arith.constant 0 : i32
    %c0_i32_2 = arith.constant 0 : i32
    return %c0_i32, %c0_i32_0, %c0_i32_1 : i32, i32, i32
  }
  func.func @transform_5(%arg0: i32) -> (i32, i32) {
    %c0_i32 = arith.constant 0 : i32
    %c0_i32_0 = arith.constant 0 : i32
    %c0_i32_1 = arith.constant 0 : i32
    return %c0_i32, %c0_i32_0 : i32, i32
  }
  func.func @transform_6(%arg0: i32) -> (i32, i32) {
    %c0_i32 = arith.constant 0 : i32
    %c0_i32_0 = arith.constant 0 : i32
    %c0_i32_1 = arith.constant 0 : i32
    return %c0_i32, %c0_i32_0 : i32, i32
  }
  func.func @transform_7(%arg0: i32) -> (i32, i32) {
    %c0_i32 = arith.constant 0 : i32
    %c0_i32_0 = arith.constant 0 : i32
    return %arg0, %c0_i32 : i32, i32
  }
}

module attributes {stable_mosaic.version = 11 : i64} {
  func.func @mlp_kernel(%arg0: i32, %arg1: memref<16x128xbf16, #tpu.memory_space<vmem>>, %arg2: memref<128x128xbf16, #tpu.memory_space<vmem>>, %arg3: memref<1x128xf32, #tpu.memory_space<vmem>>, %arg4: memref<2x128x128xbf16, #tpu.memory_space<vmem>>, %arg5: memref<2x1x128xf32, #tpu.memory_space<vmem>>, %arg6: memref<128x128xbf16, #tpu.memory_space<vmem>>, %arg7: memref<1x128xf32, #tpu.memory_space<vmem>>, %arg8: memref<16x128xf32, #tpu.memory_space<vmem>>) attributes {dimension_semantics = [#tpu.dimension_semantics<parallel>], iteration_bounds = array<i64: 1>, scalar_prefetch = 0 : i64, scratch_operands = 0 : i64, tpu.core_type = #tpu.core_type<tc>, window_params = [{transform_indices = @transform_0, window_bounds = array<i64: 16, 128>}, {pipeline_mode = #tpu.pipeline_mode<synchronous>, transform_indices = @transform_1, window_bounds = array<i64: 128, 128>}, {pipeline_mode = #tpu.pipeline_mode<synchronous>, transform_indices = @transform_2, window_bounds = array<i64: 1, 128>}, {pipeline_mode = #tpu.pipeline_mode<synchronous>, transform_indices = @transform_3, window_bounds = array<i64: 2, 128, 128>}, {pipeline_mode = #tpu.pipeline_mode<synchronous>, transform_indices = @transform_4, window_bounds = array<i64: 2, 1, 128>}, {pipeline_mode = #tpu.pipeline_mode<synchronous>, transform_indices = @transform_5, window_bounds = array<i64: 128, 128>}, {pipeline_mode = #tpu.pipeline_mode<synchronous>, transform_indices = @transform_6, window_bounds = array<i64: 1, 128>}, {transform_indices = @transform_7, window_bounds = array<i64: 16, 128>}]} {
    %c0 = arith.constant 0 : index
    %c0_0 = arith.constant 0 : index
    %0 = vector.load %arg1[%c0, %c0_0] : memref<16x128xbf16, #tpu.memory_space<vmem>>, vector<16x128xbf16>
    %c0_1 = arith.constant 0 : index
    %c0_2 = arith.constant 0 : index
    %1 = vector.load %arg2[%c0_1, %c0_2] : memref<128x128xbf16, #tpu.memory_space<vmem>>, vector<128x128xbf16>
    %cst = arith.constant dense<0.000000e+00> : vector<16x128xf32>
    %2 = tpu.matmul %0, %1, %cst {dimension_numbers = #tpu.dot_dimension_numbers<[1], [0], [0], [1], [0, 0, 1, 1], [], []>} : vector<16x128xbf16>, vector<128x128xbf16>, vector<16x128xf32> -> vector<16x128xf32>
    %c0_3 = arith.constant 0 : index
    %c0_4 = arith.constant 0 : index
    %3 = vector.load %arg3[%c0_3, %c0_4] : memref<1x128xf32, #tpu.memory_space<vmem>>, vector<1x128xf32>
    %4 = vector.broadcast %3 : vector<1x128xf32> to vector<16x128xf32>
    %5 = arith.addf %2, %4 : vector<16x128xf32>
    %6 = arith.truncf %5 : vector<16x128xf32> to vector<16x128xbf16>
    %7 = math.tanh %6 : vector<16x128xbf16>
    %c0_i32 = arith.constant 0 : i32
    %c2_i32 = arith.constant 2 : i32
    %8 = arith.addi %c0_i32, %c2_i32 : i32
    %c1_i32 = arith.constant 1 : i32
    %9 = scf.for %arg9 = %c0_i32 to %8 step %c1_i32 iter_args(%arg10 = %7) -> (vector<16x128xbf16>)  : i32 {
      %16 = arith.index_cast %arg9 : i32 to index
      %c0_13 = arith.constant 0 : index
      %c0_14 = arith.constant 0 : index
      %17 = vector.load %arg4[%16, %c0_13, %c0_14] : memref<2x128x128xbf16, #tpu.memory_space<vmem>>, vector<1x128x128xbf16>
      %18 = vector.shape_cast %17 : vector<1x128x128xbf16> to vector<128x128xbf16>
      %cst_15 = arith.constant dense<0.000000e+00> : vector<16x128xf32>
      %19 = tpu.matmul %arg10, %18, %cst_15 {dimension_numbers = #tpu.dot_dimension_numbers<[1], [0], [0], [1], [0, 0, 1, 1], [], []>} : vector<16x128xbf16>, vector<128x128xbf16>, vector<16x128xf32> -> vector<16x128xf32>
      %20 = arith.index_cast %arg9 : i32 to index
      %c0_16 = arith.constant 0 : index
      %c0_17 = arith.constant 0 : index
      %21 = vector.load %arg5[%20, %c0_16, %c0_17] : memref<2x1x128xf32, #tpu.memory_space<vmem>>, vector<1x1x128xf32>
      %22 = vector.shape_cast %21 : vector<1x1x128xf32> to vector<1x128xf32>
      %23 = vector.broadcast %22 : vector<1x128xf32> to vector<16x128xf32>
      %24 = arith.addf %19, %23 : vector<16x128xf32>
      %25 = arith.truncf %24 : vector<16x128xf32> to vector<16x128xbf16>
      %26 = math.tanh %25 : vector<16x128xbf16>
      scf.yield %26 : vector<16x128xbf16>
    }
    %c2_i32_5 = arith.constant 2 : i32
    %c0_6 = arith.constant 0 : index
    %c0_7 = arith.constant 0 : index
    %10 = vector.load %arg6[%c0_6, %c0_7] : memref<128x128xbf16, #tpu.memory_space<vmem>>, vector<128x128xbf16>
    %cst_8 = arith.constant dense<0.000000e+00> : vector<16x128xf32>
    %11 = tpu.matmul %9, %10, %cst_8 {dimension_numbers = #tpu.dot_dimension_numbers<[1], [0], [0], [1], [0, 0, 1, 1], [], []>} : vector<16x128xbf16>, vector<128x128xbf16>, vector<16x128xf32> -> vector<16x128xf32>
    %c0_9 = arith.constant 0 : index
    %c0_10 = arith.constant 0 : index
    %12 = vector.load %arg7[%c0_9, %c0_10] : memref<1x128xf32, #tpu.memory_space<vmem>>, vector<1x128xf32>
    %13 = vector.broadcast %12 : vector<1x128xf32> to vector<16x128xf32>
    %14 = arith.addf %11, %13 : vector<16x128xf32>
    %c0_11 = arith.constant 0 : index
    %c0_12 = arith.constant 0 : index
    %15 = vector.load %arg8[%c0_11, %c0_12] : memref<16x128xf32, #tpu.memory_space<vmem>>, vector<16x128xf32>
    tpu.vector_store %arg8[%c0_11, %c0_12], %14 {strides = array<i32>} : memref<16x128xf32, #tpu.memory_space<vmem>>, vector<16x128xf32>,
    return
  }
  func.func @transform_0(%arg0: i32) -> (i32, i32) {
    %c0_i32 = arith.constant 0 : i32
    %c0_i32_0 = arith.constant 0 : i32
    return %arg0, %c0_i32 : i32, i32
  }
  func.func @transform_1(%arg0: i32) -> (i32, i32) {
    %c0_i32 = arith.constant 0 : i32
    %c0_i32_0 = arith.constant 0 : i32
    %c0_i32_1 = arith.constant 0 : i32
    return %c0_i32, %c0_i32_0 : i32, i32
  }
  func.func @transform_2(%arg0: i32) -> (i32, i32) {
    %c0_i32 = arith.constant 0 : i32
    %c0_i32_0 = arith.constant 0 : i32
    %c0_i32_1 = arith.constant 0 : i32
    return %c0_i32, %c0_i32_0 : i32, i32
  }
  func.func @transform_3(%arg0: i32) -> (i32, i32, i32) {
    %c0_i32 = arith.constant 0 : i32
    %c0_i32_0 = arith.constant 0 : i32
    %c0_i32_1 = arith.constant 0 : i32
    %c0_i32_2 = arith.constant 0 : i32
    return %c0_i32, %c0_i32_0, %c0_i32_1 : i32, i32, i32
  }
  func.func @transform_4(%arg0: i32) -> (i32, i32, i32) {
    %c0_i32 = arith.constant 0 : i32
    %c0_i32_0 = arith.constant 0 : i32
    %c0_i32_1 = arith.constant 0 : i32
    %c0_i32_2 = arith.constant 0 : i32
    return %c0_i32, %c0_i32_0, %c0_i32_1 : i32, i32, i32
  }
  func.func @transform_5(%arg0: i32) -> (i32, i32) {
    %c0_i32 = arith.constant 0 : i32
    %c0_i32_0 = arith.constant 0 : i32
    %c0_i32_1 = arith.constant 0 : i32
    return %c0_i32, %c0_i32_0 : i32, i32
  }
  func.func @transform_6(%arg0: i32) -> (i32, i32) {
    %c0_i32 = arith.constant 0 : i32
    %c0_i32_0 = arith.constant 0 : i32
    %c0_i32_1 = arith.constant 0 : i32
    return %c0_i32, %c0_i32_0 : i32, i32
  }
  func.func @transform_7(%arg0: i32) -> (i32, i32) {
    %c0_i32 = arith.constant 0 : i32
    %c0_i32_0 = arith.constant 0 : i32
    return %arg0, %c0_i32 : i32, i32
  }
}

</mosaic_0001>

<llo_original>
// kernel: tpu_custom_call.1
$region0: #{tpu_custom_call.1}
  #allocation0 [shape = 'u32[]', space=smem, size = 0x4, offset = 0x4, fixed_abs, tag = 'smem constant byte address 0x4 - core index']
  #allocation1 [shape = 'u32[72,128]{1,0:T(1,128)}', space=vmem, size = 0x9000, scoped, tag = 'internal scratch']
  %s0 = inlined_call_operand.hbm [shape: bf16[16,128], index: 0, kind: input, shape index: {}]
  %s1 = inlined_call_operand.hbm [shape: bf16[128,128], index: 1, kind: input, shape index: {}]
  %s2 = inlined_call_operand.vmem [shape: f32[1,128], index: 2, kind: input, shape index: {}]
  %s3 = inlined_call_operand.hbm [shape: bf16[2,128,128], index: 3, kind: input, shape index: {}]
  %s4 = inlined_call_operand.vmem [shape: f32[2,1,128], index: 4, kind: input, shape index: {}]
  %s5 = inlined_call_operand.hbm [shape: bf16[128,128], index: 5, kind: input, shape index: {}]
  %s6 = inlined_call_operand.vmem [shape: f32[1,128], index: 6, kind: input, shape index: {}]
  %s7 = inlined_call_operand.hbm [shape: f32[16,128], index: 7, kind: output, shape index: {}]
  %s8 = sld [smem:[#allocation0]]
  $region61: #{tpu_custom_call.1} parent=0
    _
  %s10 = ssub.s32 1, %s8
  %s11 = scalar_select 0, %s10, %s8
  $region1: #{tpu_custom_call.1} parent=0
    #allocation2 [shape = 'u8[4096]{0}', space=vmem, size = 0x1000, scoped, tag = 'input window, operand 0, single buffered']
    #allocation3 [shape = 's32[1]{0}', space=sflag, size = 0x4, scoped, tag = 'scoped memory for tpu_custom_call.1']
    #allocation4 [shape = 's32[1]{0}', space=sflag, size = 0x4, scoped, tag = 'scoped memory for tpu_custom_call.1']
    #allocation5 [shape = 'u8[32768]{0}', space=vmem, size = 0x8000, scoped, tag = 'input window, operand 1, single buffered']
    #allocation6 [shape = 's32[1]{0}', space=sflag, size = 0x4, scoped, tag = 'scoped memory for tpu_custom_call.1']
    #allocation7 [shape = 'u8[65536]{0}', space=vmem, size = 0x10000, scoped, tag = 'input window, operand 3, single buffered']
    #allocation8 [shape = 'u8[32768]{0}', space=vmem, size = 0x8000, scoped, tag = 'input window, operand 5, single buffered']
    #allocation9 [shape = 's32[1]{0}', space=sflag, size = 0x4, scoped, tag = 'scoped memory for tpu_custom_call.1']
    #allocation10 [shape = 'u8[8192]{0}', space=vmem, size = 0x2000, scoped, tag = 'output window, operand 0, single buffered']
    %12 = vsyncpa [#allocation3], 0
    %13 = vsyncpa [#allocation6], 0
    %14 = vsyncpa [#allocation9], 0
    %15 = vsyncpa [#allocation4], 0
    // Predicated region
    $region2: #{tpu_custom_call.1} parent=1 // pred_check
      _
    $region3: #{tpu_custom_call.1} parent=1 // pred_check_branch
      %17 = sbr.rel (0) target = $region5
    $region4: #{tpu_custom_call.1} parent=1 // pred_region
      %19 = vsyncadd [#allocation3], 0
      %s20 = sshll.u32 %s0, 4
      %s21 = int_to_ptr.hbm [resolvable:$true] %s20
      %s22 = sshll.u32 [#allocation2], 4
      %s23 = int_to_ptr.vmem [resolvable:$true] %s22
      %28 = dma.hbm_to_vmem [thread:$0]  %s21, 128, %s23, [#allocation3], 64, 64, 4
    $region5: #{tpu_custom_call.1} parent=1 // pred_fallthru
      _
    // Predicated region
    $region6: #{tpu_custom_call.1} parent=1 // pred_check
      _
    $region7: #{tpu_custom_call.1} parent=1 // pred_check_branch
      %30 = sbr.rel (0) target = $region9
    $region8: #{tpu_custom_call.1} parent=1 // pred_region
      %32 = vsyncadd [#allocation6], 0
      %s33 = sshll.u32 %s1, 4
      %s34 = int_to_ptr.hbm [resolvable:$true] %s33
      %s35 = sshll.u32 [#allocation5], 4
      %s36 = int_to_ptr.vmem [resolvable:$true] %s35
      %41 = dma.hbm_to_vmem [thread:$0]  %s34, 1024, %s36, [#allocation6], 64, 64, 4
    $region9: #{tpu_custom_call.1} parent=1 // pred_fallthru
      _
    // Predicated region
    $region10: #{tpu_custom_call.1} parent=1 // pred_check
      _
    $region11: #{tpu_custom_call.1} parent=1 // pred_check_branch
      %43 = sbr.rel (0) target = $region13
    $region12: #{tpu_custom_call.1} parent=1 // pred_region
      _
    $region13: #{tpu_custom_call.1} parent=1 // pred_fallthru
      _
    // Predicated region
    $region14: #{tpu_custom_call.1} parent=1 // pred_check
      _
    $region15: #{tpu_custom_call.1} parent=1 // pred_check_branch
      %45 = sbr.rel (0) target = $region17
    $region16: #{tpu_custom_call.1} parent=1 // pred_region
      %47 = vsyncadd [#allocation6], 0
      %s48 = sshll.u32 %s3, 4
      %s49 = int_to_ptr.hbm [resolvable:$true] %s48
      %s50 = sshll.u32 [#allocation7], 4
      %s51 = int_to_ptr.vmem [resolvable:$true] %s50
      %56 = dma.hbm_to_vmem [thread:$0]  %s49, 2048, %s51, [#allocation6], 64, 64, 4
    $region17: #{tpu_custom_call.1} parent=1 // pred_fallthru
      _
    // Predicated region
    $region18: #{tpu_custom_call.1} parent=1 // pred_check
      _
    $region19: #{tpu_custom_call.1} parent=1 // pred_check_branch
      %58 = sbr.rel (0) target = $region21
    $region20: #{tpu_custom_call.1} parent=1 // pred_region
      _
    $region21: #{tpu_custom_call.1} parent=1 // pred_fallthru
      _
    // Predicated region
    $region22: #{tpu_custom_call.1} parent=1 // pred_check
      _
    $region23: #{tpu_custom_call.1} parent=1 // pred_check_branch
      %60 = sbr.rel (0) target = $region25
    $region24: #{tpu_custom_call.1} parent=1 // pred_region
      %62 = vsyncadd [#allocation9], 0
      %s63 = sshll.u32 %s5, 4
      %s64 = int_to_ptr.hbm [resolvable:$true] %s63
      %s65 = sshll.u32 [#allocation8], 4
      %s66 = int_to_ptr.vmem [resolvable:$true] %s65
      %71 = dma.hbm_to_vmem [thread:$0]  %s64, 1024, %s66, [#allocation9], 64, 64, 4
    $region25: #{tpu_custom_call.1} parent=1 // pred_fallthru
      _
    // Predicated region
    $region26: #{tpu_custom_call.1} parent=1 // pred_check
      _
    $region27: #{tpu_custom_call.1} parent=1 // pred_check_branch
      %73 = sbr.rel (0) target = $region29
    $region28: #{tpu_custom_call.1} parent=1 // pred_region
      _
    $region29: #{tpu_custom_call.1} parent=1 // pred_fallthru
      _
    // Predicated region
    $region30: #{tpu_custom_call.1} parent=1 // pred_check
      _
    $region31: #{tpu_custom_call.1} parent=1 // pred_check_branch
      %75 = sbr.rel (0) target = $region33
    $region32: #{tpu_custom_call.1} parent=1 // pred_region
      %77 = dma.done [#allocation3], 128
    $region33: #{tpu_custom_call.1} parent=1 // pred_fallthru
      _
    // Predicated region
    $region34: #{tpu_custom_call.1} parent=1 // pred_check
      _
    $region35: #{tpu_custom_call.1} parent=1 // pred_check_branch
      %79 = sbr.rel (0) target = $region37
    $region36: #{tpu_custom_call.1} parent=1 // pred_region
      %81 = dma.done [#allocation6], 1024
    $region37: #{tpu_custom_call.1} parent=1 // pred_fallthru
      _
    // Predicated region
    $region38: #{tpu_custom_call.1} parent=1 // pred_check
      _
    $region39: #{tpu_custom_call.1} parent=1 // pred_check_branch
      %83 = sbr.rel (0) target = $region41
    $region40: #{tpu_custom_call.1} parent=1 // pred_region
      %85 = dma.done [#allocation6], 2048
    $region41: #{tpu_custom_call.1} parent=1 // pred_fallthru
      _
    // Predicated region
    $region42: #{tpu_custom_call.1} parent=1 // pred_check
      _
    $region43: #{tpu_custom_call.1} parent=1 // pred_check_branch
      %87 = sbr.rel (0) target = $region45
    $region44: #{tpu_custom_call.1} parent=1 // pred_region
      %89 = dma.done [#allocation9], 1024
    $region45: #{tpu_custom_call.1} parent=1 // pred_fallthru
      _
    %v90 = vld [vmem:[#allocation2] sm:$0xf]
    %v91 = vld [vmem:[#allocation2 + $0x4] sm:$0xf]
    %v92 = vld [vmem:[#allocation5] sm:$0xf]
    %v93 = vld [vmem:[#allocation5 + $0x4] sm:$0xf]
    %v94 = vld [vmem:[#allocation5 + $0x8] sm:$0xf]
    %v95 = vld [vmem:[#allocation5 + $0xc] sm:$0xf]
    %v96 = vld [vmem:[#allocation5 + $0x10] sm:$0xf]
    %v97 = vld [vmem:[#allocation5 + $0x14] sm:$0xf]
    %v98 = vld [vmem:[#allocation5 + $0x18] sm:$0xf]
    %v99 = vld [vmem:[#allocation5 + $0x1c] sm:$0xf]
    %v100 = vld [vmem:[#allocation5 + $0x20] sm:$0xf]
    %v101 = vld [vmem:[#allocation5 + $0x24] sm:$0xf]
    %v102 = vld [vmem:[#allocation5 + $0x28] sm:$0xf]
    %v103 = vld [vmem:[#allocation5 + $0x2c] sm:$0xf]
    %v104 = vld [vmem:[#allocation5 + $0x30] sm:$0xf]
    %v105 = vld [vmem:[#allocation5 + $0x34] sm:$0xf]
    %v106 = vld [vmem:[#allocation5 + $0x38] sm:$0xf]
    %v107 = vld [vmem:[#allocation5 + $0x3c] sm:$0xf]
    %v108 = vld [vmem:[%s2] sm:$0x1]
    %v110 = vperm.slane %v108, 0
    %v114 = vunpack.c.l.b16 %v90
    %v115 = vunpack.c.l.b16 %v91
    %v116 = vpack.c.b16 %v115, %v114
    %v134 = vunpack.c.l.b16 %v92
    %v135 = vunpack.c.l.b16 %v93
    %v136 = vunpack.c.l.b16 %v94
    %v137 = vunpack.c.l.b16 %v95
    %v138 = vunpack.c.l.b16 %v96
    %v139 = vunpack.c.l.b16 %v97
    %v140 = vunpack.c.l.b16 %v98
    %v141 = vunpack.c.l.b16 %v99
    %v142 = vunpack.c.l.b16 %v100
    %v143 = vunpack.c.l.b16 %v101
    %v144 = vunpack.c.l.b16 %v102
    %v145 = vunpack.c.l.b16 %v103
    %v146 = vunpack.c.l.b16 %v104
    %v147 = vunpack.c.l.b16 %v105
    %v148 = vunpack.c.l.b16 %v106
    %v149 = vunpack.c.l.b16 %v107
    %v150 = vpack.c.b16 %v135, %v134
    %v151 = vpack.c.b16 %v137, %v136
    %v152 = vpack.c.b16 %v139, %v138
    %v153 = vpack.c.b16 %v141, %v140
    %v154 = vpack.c.b16 %v143, %v142
    %v155 = vpack.c.b16 %v145, %v144
    %v156 = vpack.c.b16 %v147, %v146
    %v157 = vpack.c.b16 %v149, %v148
    %166 = vmatpush.bf16.msra.mxu0 %v157
    %167 = vmatpush.bf16.msra.mxu0 %v156
    %168 = vmatpush.bf16.msra.mxu0 %v155
    %169 = vmatpush.bf16.msra.mxu0 %v154
    %170 = vmatpush.bf16.msra.mxu0 %v153
    %171 = vmatpush.bf16.msra.mxu0 %v152
    %172 = vmatpush.bf16.msra.mxu0 %v151
    %173 = vmatpush.bf16.msra.mxu0 %v150
    %174 = vmatmul.bf16.gmra.mxu0 %v116
    %v175 = vpop.f32.mrf.mxu0
    %v176 = vadd.f32 %v110, %v175
    %v177 = vpop.f32.mrf.mxu0
    %v178 = vadd.f32 %v110, %v177
    %179 = vdwg.mxu0
    %v180 = vpack.c.bf16 %v176, %v176
    %v181 = vpack.c.bf16 %v178, %v178
    %v182 = vunpack.c.l.bf16 %v180
    %v183 = vunpack.c.l.bf16 %v181
    %v184 = vtanh.pop %v182
    %v185 = vtanh.pop %v183
    %v186 = vpack.c.bf16 %v184, %v184
    %v187 = vpack.c.bf16 %v185, %v185
    loop: start=0, step=1, limit=2
    $region46: #{tpu_custom_call.1} parent=1 // loop_pre_header
      _
    $region47: #{tpu_custom_call.1} parent=1 // loop_header
      %s189 = sphi 0, %s193
      %p190 = scmp.ge.s32.totalorder %s189, 2
      %v194 = vphi %v186, %v294
      %v195 = vphi %v187, %v295
    $region48: #{tpu_custom_call.1} parent=1 // loop_header_branch
      %192 = sbr.rel (%p190) target = $region52
    $region49: #{tpu_custom_call.1} parent=1 // loop_body
      %s196 = smul.u32 %s189, 16
      %s197 = smul.addr %s196, 4
      %s198 = scalar_lea.vmem [#allocation7], %s197
      %v199 = vld [vmem:[%s198] sm:$0xf]
      %v200 = vld [vmem:[%s198 + $0x4] sm:$0xf]
      %v201 = vld [vmem:[%s198 + $0x8] sm:$0xf]
      %v202 = vld [vmem:[%s198 + $0xc] sm:$0xf]
      %v203 = vld [vmem:[%s198 + $0x10] sm:$0xf]
      %v204 = vld [vmem:[%s198 + $0x14] sm:$0xf]
      %v205 = vld [vmem:[%s198 + $0x18] sm:$0xf]
      %v206 = vld [vmem:[%s198 + $0x1c] sm:$0xf]
      %v207 = vld [vmem:[%s198 + $0x20] sm:$0xf]
      %v208 = vld [vmem:[%s198 + $0x24] sm:$0xf]
      %v209 = vld [vmem:[%s198 + $0x28] sm:$0xf]
      %v210 = vld [vmem:[%s198 + $0x2c] sm:$0xf]
      %v211 = vld [vmem:[%s198 + $0x30] sm:$0xf]
      %v212 = vld [vmem:[%s198 + $0x34] sm:$0xf]
      %v213 = vld [vmem:[%s198 + $0x38] sm:$0xf]
      %v214 = vld [vmem:[%s198 + $0x3c] sm:$0xf]
      %s215 = scalar_lea.vmem %s4, %s189
      %v216 = vld [vmem:[%s215] sm:$0x1]
      %v218 = vperm.slane %v216, 0
      %v222 = vunpack.c.l.b16 %v194
      %v223 = vunpack.c.l.b16 %v195
      %v224 = vpack.c.b16 %v223, %v222
      %v242 = vunpack.c.l.b16 %v199
      %v243 = vunpack.c.l.b16 %v200
      %v244 = vunpack.c.l.b16 %v201
      %v245 = vunpack.c.l.b16 %v202
      %v246 = vunpack.c.l.b16 %v203
      %v247 = vunpack.c.l.b16 %v204
      %v248 = vunpack.c.l.b16 %v205
      %v249 = vunpack.c.l.b16 %v206
      %v250 = vunpack.c.l.b16 %v207
      %v251 = vunpack.c.l.b16 %v208
      %v252 = vunpack.c.l.b16 %v209
      %v253 = vunpack.c.l.b16 %v210
      %v254 = vunpack.c.l.b16 %v211
      %v255 = vunpack.c.l.b16 %v212
      %v256 = vunpack.c.l.b16 %v213
      %v257 = vunpack.c.l.b16 %v214
      %v258 = vpack.c.b16 %v243, %v242
      %v259 = vpack.c.b16 %v245, %v244
      %v260 = vpack.c.b16 %v247, %v246
      %v261 = vpack.c.b16 %v249, %v248
      %v262 = vpack.c.b16 %v251, %v250
      %v263 = vpack.c.b16 %v253, %v252
      %v264 = vpack.c.b16 %v255, %v254
      %v265 = vpack.c.b16 %v257, %v256
      %274 = vmatpush.bf16.msra.mxu0 %v265
      %275 = vmatpush.bf16.msra.mxu0 %v264
      %276 = vmatpush.bf16.msra.mxu0 %v263
      %277 = vmatpush.bf16.msra.mxu0 %v262
      %278 = vmatpush.bf16.msra.mxu0 %v261
      %279 = vmatpush.bf16.msra.mxu0 %v260
      %280 = vmatpush.bf16.msra.mxu0 %v259
      %281 = vmatpush.bf16.msra.mxu0 %v258
      %282 = vmatmul.bf16.gmra.mxu0 %v224
      %v283 = vpop.f32.mrf.mxu0
      %v284 = vadd.f32 %v218, %v283
      %v285 = vpop.f32.mrf.mxu0
      %v286 = vadd.f32 %v218, %v285
      %287 = vdwg.mxu0
      %v288 = vpack.c.bf16 %v284, %v284
      %v289 = vpack.c.bf16 %v286, %v286
      %v290 = vunpack.c.l.bf16 %v288
      %v291 = vunpack.c.l.bf16 %v289
      %v292 = vtanh.pop %v290
      %v293 = vtanh.pop %v291
      %v294 = vpack.c.bf16 %v292, %v292
      %v295 = vpack.c.bf16 %v293, %v293
    $region50: #{tpu_custom_call.1} parent=1 // loop_footer
      %s193 = sadd.s32 1, %s189
    $region51: #{tpu_custom_call.1} parent=1 // loop_footer_branch
      %188 = sbr.rel target = $region47
    $region52: #{tpu_custom_call.1} parent=1 // loop_exit
      _
    %v296 = vld [vmem:[#allocation8] sm:$0xf]
    %v297 = vld [vmem:[#allocation8 + $0x4] sm:$0xf]
    %v298 = vld [vmem:[#allocation8 + $0x8] sm:$0xf]
    %v299 = vld [vmem:[#allocation8 + $0xc] sm:$0xf]
    %v300 = vld [vmem:[#allocation8 + $0x10] sm:$0xf]
    %v301 = vld [vmem:[#allocation8 + $0x14] sm:$0xf]
    %v302 = vld [vmem:[#allocation8 + $0x18] sm:$0xf]
    %v303 = vld [vmem:[#allocation8 + $0x1c] sm:$0xf]
    %v304 = vld [vmem:[#allocation8 + $0x20] sm:$0xf]
    %v305 = vld [vmem:[#allocation8 + $0x24] sm:$0xf]
    %v306 = vld [vmem:[#allocation8 + $0x28] sm:$0xf]
    %v307 = vld [vmem:[#allocation8 + $0x2c] sm:$0xf]
    %v308 = vld [vmem:[#allocation8 + $0x30] sm:$0xf]
    %v309 = vld [vmem:[#allocation8 + $0x34] sm:$0xf]
    %v310 = vld [vmem:[#allocation8 + $0x38] sm:$0xf]
    %v311 = vld [vmem:[#allocation8 + $0x3c] sm:$0xf]
    %v312 = vld [vmem:[%s6] sm:$0x1]
    %v314 = vperm.slane %v312, 0
    %v318 = vunpack.c.l.b16 %v194
    %v319 = vunpack.c.l.b16 %v195
    %v320 = vpack.c.b16 %v319, %v318
    %v338 = vunpack.c.l.b16 %v296
    %v339 = vunpack.c.l.b16 %v297
    %v340 = vunpack.c.l.b16 %v298
    %v341 = vunpack.c.l.b16 %v299
    %v342 = vunpack.c.l.b16 %v300
    %v343 = vunpack.c.l.b16 %v301
    %v344 = vunpack.c.l.b16 %v302
    %v345 = vunpack.c.l.b16 %v303
    %v346 = vunpack.c.l.b16 %v304
    %v347 = vunpack.c.l.b16 %v305
    %v348 = vunpack.c.l.b16 %v306
    %v349 = vunpack.c.l.b16 %v307
    %v350 = vunpack.c.l.b16 %v308
    %v351 = vunpack.c.l.b16 %v309
    %v352 = vunpack.c.l.b16 %v310
    %v353 = vunpack.c.l.b16 %v311
    %v354 = vpack.c.b16 %v339, %v338
    %v355 = vpack.c.b16 %v341, %v340
    %v356 = vpack.c.b16 %v343, %v342
    %v357 = vpack.c.b16 %v345, %v344
    %v358 = vpack.c.b16 %v347, %v346
    %v359 = vpack.c.b16 %v349, %v348
    %v360 = vpack.c.b16 %v351, %v350
    %v361 = vpack.c.b16 %v353, %v352
    %370 = vmatpush.bf16.msra.mxu0 %v361
    %371 = vmatpush.bf16.msra.mxu0 %v360
    %372 = vmatpush.bf16.msra.mxu0 %v359
    %373 = vmatpush.bf16.msra.mxu0 %v358
    %374 = vmatpush.bf16.msra.mxu0 %v357
    %375 = vmatpush.bf16.msra.mxu0 %v356
    %376 = vmatpush.bf16.msra.mxu0 %v355
    %377 = vmatpush.bf16.msra.mxu0 %v354
    %378 = vmatmul.bf16.gmra.mxu0 %v320
    %v379 = vpop.f32.mrf.mxu0
    %v380 = vadd.f32 %v314, %v379
    %v381 = vpop.f32.mrf.mxu0
    %v382 = vadd.f32 %v314, %v381
    %383 = vdwg.mxu0
    %384 = vst [vmem:[#allocation10] sm:$0xff] %v380
    %385 = vst [vmem:[#allocation10 + $0x8] sm:$0xff] %v382
    // Predicated region
    $region53: #{tpu_custom_call.1} parent=1 // pred_check
      _
    $region54: #{tpu_custom_call.1} parent=1 // pred_check_branch
      %387 = sbr.rel (0) target = $region56
    $region55: #{tpu_custom_call.1} parent=1 // pred_region
      %389 = vsyncadd [#allocation4], 0
      %s390 = sshll.u32 [#allocation10], 4
      %s391 = int_to_ptr.vmem [resolvable:$true] %s390
      %s392 = sshll.u32 %s7, 4
      %s393 = int_to_ptr.hbm [resolvable:$true] %s392
      %398 = dma.vmem_to_hbm [thread:$0]  %s391, 256, %s393, [#allocation4], 128, 128, 8
    $region56: #{tpu_custom_call.1} parent=1 // pred_fallthru
      _
    // Predicated region
    $region57: #{tpu_custom_call.1} parent=1 // pred_check
      _
    $region58: #{tpu_custom_call.1} parent=1 // pred_check_branch
      %400 = sbr.rel (0) target = $region60
    $region59: #{tpu_custom_call.1} parent=1 // pred_region
      %402 = dma.done [#allocation4], 256
    $region60: #{tpu_custom_call.1} parent=1 // pred_fallthru
      _
    %403 = vsyncpa [#allocation3], 1
    %404 = vsyncpa [#allocation6], 1
    %405 = vsyncpa [#allocation9], 1
    %406 = vsyncpa [#allocation4], 1

// kernel: tpu_custom_call.1
$region0: #{tpu_custom_call.1}
  #allocation0 [shape = 'u32[]', space=smem, size = 0x4, offset = 0x4, fixed_abs, tag = 'smem constant byte address 0x4 - core index']
  #allocation1 [shape = 'u32[72,128]{1,0:T(1,128)}', space=vmem, size = 0x9000, scoped, tag = 'internal scratch']
  %s0 = inlined_call_operand.hbm [shape: bf16[16,128], index: 0, kind: input, shape index: {}]
  %s1 = inlined_call_operand.hbm [shape: bf16[128,128], index: 1, kind: input, shape index: {}]
  %s2 = inlined_call_operand.vmem [shape: f32[1,128], index: 2, kind: input, shape index: {}]
  %s3 = inlined_call_operand.hbm [shape: bf16[2,128,128], index: 3, kind: input, shape index: {}]
  %s4 = inlined_call_operand.vmem [shape: f32[2,1,128], index: 4, kind: input, shape index: {}]
  %s5 = inlined_call_operand.hbm [shape: bf16[128,128], index: 5, kind: input, shape index: {}]
  %s6 = inlined_call_operand.vmem [shape: f32[1,128], index: 6, kind: input, shape index: {}]
  %s7 = inlined_call_operand.hbm [shape: f32[16,128], index: 7, kind: output, shape index: {}]
  %s8 = sld [smem:[#allocation0]]
  $region61: #{tpu_custom_call.1} parent=0
    _
  %s10 = ssub.s32 1, %s8
  %s11 = scalar_select 0, %s10, %s8
  $region1: #{tpu_custom_call.1} parent=0
    #allocation2 [shape = 'u8[4096]{0}', space=vmem, size = 0x1000, scoped, tag = 'input window, operand 0, single buffered']
    #allocation3 [shape = 's32[1]{0}', space=sflag, size = 0x4, scoped, tag = 'scoped memory for tpu_custom_call.1']
    #allocation4 [shape = 's32[1]{0}', space=sflag, size = 0x4, scoped, tag = 'scoped memory for tpu_custom_call.1']
    #allocation5 [shape = 'u8[32768]{0}', space=vmem, size = 0x8000, scoped, tag = 'input window, operand 1, single buffered']
    #allocation6 [shape = 's32[1]{0}', space=sflag, size = 0x4, scoped, tag = 'scoped memory for tpu_custom_call.1']
    #allocation7 [shape = 'u8[65536]{0}', space=vmem, size = 0x10000, scoped, tag = 'input window, operand 3, single buffered']
    #allocation8 [shape = 'u8[32768]{0}', space=vmem, size = 0x8000, scoped, tag = 'input window, operand 5, single buffered']
    #allocation9 [shape = 's32[1]{0}', space=sflag, size = 0x4, scoped, tag = 'scoped memory for tpu_custom_call.1']
    #allocation10 [shape = 'u8[8192]{0}', space=vmem, size = 0x2000, scoped, tag = 'output window, operand 0, single buffered']
    %12 = vsyncpa [#allocation3], 0
    %13 = vsyncpa [#allocation6], 0
    %14 = vsyncpa [#allocation9], 0
    %15 = vsyncpa [#allocation4], 0
    // Predicated region
    $region2: #{tpu_custom_call.1} parent=1 // pred_check
      _
    $region3: #{tpu_custom_call.1} parent=1 // pred_check_branch
      %17 = sbr.rel (0) target = $region5
    $region4: #{tpu_custom_call.1} parent=1 // pred_region
      %19 = vsyncadd [#allocation3], 0
      %s20 = sshll.u32 %s0, 4
      %s21 = int_to_ptr.hbm [resolvable:$true] %s20
      %s22 = sshll.u32 [#allocation2], 4
      %s23 = int_to_ptr.vmem [resolvable:$true] %s22
      %28 = dma.hbm_to_vmem [thread:$0]  %s21, 128, %s23, [#allocation3], 64, 64, 4
    $region5: #{tpu_custom_call.1} parent=1 // pred_fallthru
      _
    // Predicated region
    $region6: #{tpu_custom_call.1} parent=1 // pred_check
      _
    $region7: #{tpu_custom_call.1} parent=1 // pred_check_branch
      %30 = sbr.rel (0) target = $region9
    $region8: #{tpu_custom_call.1} parent=1 // pred_region
      %32 = vsyncadd [#allocation6], 0
      %s33 = sshll.u32 %s1, 4
      %s34 = int_to_ptr.hbm [resolvable:$true] %s33
      %s35 = sshll.u32 [#allocation5], 4
      %s36 = int_to_ptr.vmem [resolvable:$true] %s35
      %41 = dma.hbm_to_vmem [thread:$0]  %s34, 1024, %s36, [#allocation6], 64, 64, 4
    $region9: #{tpu_custom_call.1} parent=1 // pred_fallthru
      _
    // Predicated region
    $region10: #{tpu_custom_call.1} parent=1 // pred_check
      _
    $region11: #{tpu_custom_call.1} parent=1 // pred_check_branch
      %43 = sbr.rel (0) target = $region13
    $region12: #{tpu_custom_call.1} parent=1 // pred_region
      _
    $region13: #{tpu_custom_call.1} parent=1 // pred_fallthru
      _
    // Predicated region
    $region14: #{tpu_custom_call.1} parent=1 // pred_check
      _
    $region15: #{tpu_custom_call.1} parent=1 // pred_check_branch
      %45 = sbr.rel (0) target = $region17
    $region16: #{tpu_custom_call.1} parent=1 // pred_region
      %47 = vsyncadd [#allocation6], 0
      %s48 = sshll.u32 %s3, 4
      %s49 = int_to_ptr.hbm [resolvable:$true] %s48
      %s50 = sshll.u32 [#allocation7], 4
      %s51 = int_to_ptr.vmem [resolvable:$true] %s50
      %56 = dma.hbm_to_vmem [thread:$0]  %s49, 2048, %s51, [#allocation6], 64, 64, 4
    $region17: #{tpu_custom_call.1} parent=1 // pred_fallthru
      _
    // Predicated region
    $region18: #{tpu_custom_call.1} parent=1 // pred_check
      _
    $region19: #{tpu_custom_call.1} parent=1 // pred_check_branch
      %58 = sbr.rel (0) target = $region21
    $region20: #{tpu_custom_call.1} parent=1 // pred_region
      _
    $region21: #{tpu_custom_call.1} parent=1 // pred_fallthru
      _
    // Predicated region
    $region22: #{tpu_custom_call.1} parent=1 // pred_check
      _
    $region23: #{tpu_custom_call.1} parent=1 // pred_check_branch
      %60 = sbr.rel (0) target = $region25
    $region24: #{tpu_custom_call.1} parent=1 // pred_region
      %62 = vsyncadd [#allocation9], 0
      %s63 = sshll.u32 %s5, 4
      %s64 = int_to_ptr.hbm [resolvable:$true] %s63
      %s65 = sshll.u32 [#allocation8], 4
      %s66 = int_to_ptr.vmem [resolvable:$true] %s65
      %71 = dma.hbm_to_vmem [thread:$0]  %s64, 1024, %s66, [#allocation9], 64, 64, 4
    $region25: #{tpu_custom_call.1} parent=1 // pred_fallthru
      _
    // Predicated region
    $region26: #{tpu_custom_call.1} parent=1 // pred_check
      _
    $region27: #{tpu_custom_call.1} parent=1 // pred_check_branch
      %73 = sbr.rel (0) target = $region29
    $region28: #{tpu_custom_call.1} parent=1 // pred_region
      _
    $region29: #{tpu_custom_call.1} parent=1 // pred_fallthru
      _
    // Predicated region
    $region30: #{tpu_custom_call.1} parent=1 // pred_check
      _
    $region31: #{tpu_custom_call.1} parent=1 // pred_check_branch
      %75 = sbr.rel (0) target = $region33
    $region32: #{tpu_custom_call.1} parent=1 // pred_region
      %77 = dma.done [#allocation3], 128
    $region33: #{tpu_custom_call.1} parent=1 // pred_fallthru
      _
    // Predicated region
    $region34: #{tpu_custom_call.1} parent=1 // pred_check
      _
    $region35: #{tpu_custom_call.1} parent=1 // pred_check_branch
      %79 = sbr.rel (0) target = $region37
    $region36: #{tpu_custom_call.1} parent=1 // pred_region
      %81 = dma.done [#allocation6], 1024
    $region37: #{tpu_custom_call.1} parent=1 // pred_fallthru
      _
    // Predicated region
    $region38: #{tpu_custom_call.1} parent=1 // pred_check
      _
    $region39: #{tpu_custom_call.1} parent=1 // pred_check_branch
      %83 = sbr.rel (0) target = $region41
    $region40: #{tpu_custom_call.1} parent=1 // pred_region
      %85 = dma.done [#allocation6], 2048
    $region41: #{tpu_custom_call.1} parent=1 // pred_fallthru
      _
    // Predicated region
    $region42: #{tpu_custom_call.1} parent=1 // pred_check
      _
    $region43: #{tpu_custom_call.1} parent=1 // pred_check_branch
      %87 = sbr.rel (0) target = $region45
    $region44: #{tpu_custom_call.1} parent=1 // pred_region
      %89 = dma.done [#allocation9], 1024
    $region45: #{tpu_custom_call.1} parent=1 // pred_fallthru
      _
    %v90 = vld [vmem:[#allocation2] sm:$0xf]
    %v91 = vld [vmem:[#allocation2 + $0x4] sm:$0xf]
    %v92 = vld [vmem:[#allocation5] sm:$0xf]
    %v93 = vld [vmem:[#allocation5 + $0x4] sm:$0xf]
    %v94 = vld [vmem:[#allocation5 + $0x8] sm:$0xf]
    %v95 = vld [vmem:[#allocation5 + $0xc] sm:$0xf]
    %v96 = vld [vmem:[#allocation5 + $0x10] sm:$0xf]
    %v97 = vld [vmem:[#allocation5 + $0x14] sm:$0xf]
    %v98 = vld [vmem:[#allocation5 + $0x18] sm:$0xf]
    %v99 = vld [vmem:[#allocation5 + $0x1c] sm:$0xf]
    %v100 = vld [vmem:[#allocation5 + $0x20] sm:$0xf]
    %v101 = vld [vmem:[#allocation5 + $0x24] sm:$0xf]
    %v102 = vld [vmem:[#allocation5 + $0x28] sm:$0xf]
    %v103 = vld [vmem:[#allocation5 + $0x2c] sm:$0xf]
    %v104 = vld [vmem:[#allocation5 + $0x30] sm:$0xf]
    %v105 = vld [vmem:[#allocation5 + $0x34] sm:$0xf]
    %v106 = vld [vmem:[#allocation5 + $0x38] sm:$0xf]
    %v107 = vld [vmem:[#allocation5 + $0x3c] sm:$0xf]
    %v108 = vld [vmem:[%s2] sm:$0x1]
    %v110 = vperm.slane %v108, 0
    %v114 = vunpack.c.l.b16 %v90
    %v115 = vunpack.c.l.b16 %v91
    %v116 = vpack.c.b16 %v115, %v114
    %v134 = vunpack.c.l.b16 %v92
    %v135 = vunpack.c.l.b16 %v93
    %v136 = vunpack.c.l.b16 %v94
    %v137 = vunpack.c.l.b16 %v95
    %v138 = vunpack.c.l.b16 %v96
    %v139 = vunpack.c.l.b16 %v97
    %v140 = vunpack.c.l.b16 %v98
    %v141 = vunpack.c.l.b16 %v99
    %v142 = vunpack.c.l.b16 %v100
    %v143 = vunpack.c.l.b16 %v101
    %v144 = vunpack.c.l.b16 %v102
    %v145 = vunpack.c.l.b16 %v103
    %v146 = vunpack.c.l.b16 %v104
    %v147 = vunpack.c.l.b16 %v105
    %v148 = vunpack.c.l.b16 %v106
    %v149 = vunpack.c.l.b16 %v107
    %v150 = vpack.c.b16 %v135, %v134
    %v151 = vpack.c.b16 %v137, %v136
    %v152 = vpack.c.b16 %v139, %v138
    %v153 = vpack.c.b16 %v141, %v140
    %v154 = vpack.c.b16 %v143, %v142
    %v155 = vpack.c.b16 %v145, %v144
    %v156 = vpack.c.b16 %v147, %v146
    %v157 = vpack.c.b16 %v149, %v148
    %166 = vmatpush.bf16.msra.mxu0 %v157
    %167 = vmatpush.bf16.msra.mxu0 %v156
    %168 = vmatpush.bf16.msra.mxu0 %v155
    %169 = vmatpush.bf16.msra.mxu0 %v154
    %170 = vmatpush.bf16.msra.mxu0 %v153
    %171 = vmatpush.bf16.msra.mxu0 %v152
    %172 = vmatpush.bf16.msra.mxu0 %v151
    %173 = vmatpush.bf16.msra.mxu0 %v150
    %174 = vmatmul.bf16.gmra.mxu0 %v116
    %v175 = vpop.f32.mrf.mxu0
    %v176 = vadd.f32 %v110, %v175
    %v177 = vpop.f32.mrf.mxu0
    %v178 = vadd.f32 %v110, %v177
    %179 = vdwg.mxu0
    %v180 = vpack.c.bf16 %v176, %v176
    %v181 = vpack.c.bf16 %v178, %v178
    %v182 = vunpack.c.l.bf16 %v180
    %v183 = vunpack.c.l.bf16 %v181
    %v184 = vtanh.pop %v182
    %v185 = vtanh.pop %v183
    %v186 = vpack.c.bf16 %v184, %v184
    %v187 = vpack.c.bf16 %v185, %v185
    loop: start=0, step=1, limit=2
    $region46: #{tpu_custom_call.1} parent=1 // loop_pre_header
      _
    $region47: #{tpu_custom_call.1} parent=1 // loop_header
      %s189 = sphi 0, %s193
      %p190 = scmp.ge.s32.totalorder %s189, 2
      %v194 = vphi %v186, %v294
      %v195 = vphi %v187, %v295
    $region48: #{tpu_custom_call.1} parent=1 // loop_header_branch
      %192 = sbr.rel (%p190) target = $region52
    $region49: #{tpu_custom_call.1} parent=1 // loop_body
      %s196 = smul.u32 %s189, 16
      %s197 = smul.addr %s196, 4
      %s198 = scalar_lea.vmem [#allocation7], %s197
      %v199 = vld [vmem:[%s198] sm:$0xf]
      %v200 = vld [vmem:[%s198 + $0x4] sm:$0xf]
      %v201 = vld [vmem:[%s198 + $0x8] sm:$0xf]
      %v202 = vld [vmem:[%s198 + $0xc] sm:$0xf]
      %v203 = vld [vmem:[%s198 + $0x10] sm:$0xf]
      %v204 = vld [vmem:[%s198 + $0x14] sm:$0xf]
      %v205 = vld [vmem:[%s198 + $0x18] sm:$0xf]
      %v206 = vld [vmem:[%s198 + $0x1c] sm:$0xf]
      %v207 = vld [vmem:[%s198 + $0x20] sm:$0xf]
      %v208 = vld [vmem:[%s198 + $0x24] sm:$0xf]
      %v209 = vld [vmem:[%s198 + $0x28] sm:$0xf]
      %v210 = vld [vmem:[%s198 + $0x2c] sm:$0xf]
      %v211 = vld [vmem:[%s198 + $0x30] sm:$0xf]
      %v212 = vld [vmem:[%s198 + $0x34] sm:$0xf]
      %v213 = vld [vmem:[%s198 + $0x38] sm:$0xf]
      %v214 = vld [vmem:[%s198 + $0x3c] sm:$0xf]
      %s215 = scalar_lea.vmem %s4, %s189
      %v216 = vld [vmem:[%s215] sm:$0x1]
      %v218 = vperm.slane %v216, 0
      %v222 = vunpack.c.l.b16 %v194
      %v223 = vunpack.c.l.b16 %v195
      %v224 = vpack.c.b16 %v223, %v222
      %v242 = vunpack.c.l.b16 %v199
      %v243 = vunpack.c.l.b16 %v200
      %v244 = vunpack.c.l.b16 %v201
      %v245 = vunpack.c.l.b16 %v202
      %v246 = vunpack.c.l.b16 %v203
      %v247 = vunpack.c.l.b16 %v204
      %v248 = vunpack.c.l.b16 %v205
      %v249 = vunpack.c.l.b16 %v206
      %v250 = vunpack.c.l.b16 %v207
      %v251 = vunpack.c.l.b16 %v208
      %v252 = vunpack.c.l.b16 %v209
      %v253 = vunpack.c.l.b16 %v210
      %v254 = vunpack.c.l.b16 %v211
      %v255 = vunpack.c.l.b16 %v212
      %v256 = vunpack.c.l.b16 %v213
      %v257 = vunpack.c.l.b16 %v214
      %v258 = vpack.c.b16 %v243, %v242
      %v259 = vpack.c.b16 %v245, %v244
      %v260 = vpack.c.b16 %v247, %v246
      %v261 = vpack.c.b16 %v249, %v248
      %v262 = vpack.c.b16 %v251, %v250
      %v263 = vpack.c.b16 %v253, %v252
      %v264 = vpack.c.b16 %v255, %v254
      %v265 = vpack.c.b16 %v257, %v256
      %274 = vmatpush.bf16.msra.mxu0 %v265
      %275 = vmatpush.bf16.msra.mxu0 %v264
      %276 = vmatpush.bf16.msra.mxu0 %v263
      %277 = vmatpush.bf16.msra.mxu0 %v262
      %278 = vmatpush.bf16.msra.mxu0 %v261
      %279 = vmatpush.bf16.msra.mxu0 %v260
      %280 = vmatpush.bf16.msra.mxu0 %v259
      %281 = vmatpush.bf16.msra.mxu0 %v258
      %282 = vmatmul.bf16.gmra.mxu0 %v224
      %v283 = vpop.f32.mrf.mxu0
      %v284 = vadd.f32 %v218, %v283
      %v285 = vpop.f32.mrf.mxu0
      %v286 = vadd.f32 %v218, %v285
      %287 = vdwg.mxu0
      %v288 = vpack.c.bf16 %v284, %v284
      %v289 = vpack.c.bf16 %v286, %v286
      %v290 = vunpack.c.l.bf16 %v288
      %v291 = vunpack.c.l.bf16 %v289
      %v292 = vtanh.pop %v290
      %v293 = vtanh.pop %v291
      %v294 = vpack.c.bf16 %v292, %v292
      %v295 = vpack.c.bf16 %v293, %v293
    $region50: #{tpu_custom_call.1} parent=1 // loop_footer
      %s193 = sadd.s32 1, %s189
    $region51: #{tpu_custom_call.1} parent=1 // loop_footer_branch
      %188 = sbr.rel target = $region47
    $region52: #{tpu_custom_call.1} parent=1 // loop_exit
      _
    %v296 = vld [vmem:[#allocation8] sm:$0xf]
    %v297 = vld [vmem:[#allocation8 + $0x4] sm:$0xf]
    %v298 = vld [vmem:[#allocation8 + $0x8] sm:$0xf]
    %v299 = vld [vmem:[#allocation8 + $0xc] sm:$0xf]
    %v300 = vld [vmem:[#allocation8 + $0x10] sm:$0xf]
    %v301 = vld [vmem:[#allocation8 + $0x14] sm:$0xf]
    %v302 = vld [vmem:[#allocation8 + $0x18] sm:$0xf]
    %v303 = vld [vmem:[#allocation8 + $0x1c] sm:$0xf]
    %v304 = vld [vmem:[#allocation8 + $0x20] sm:$0xf]
    %v305 = vld [vmem:[#allocation8 + $0x24] sm:$0xf]
    %v306 = vld [vmem:[#allocation8 + $0x28] sm:$0xf]
    %v307 = vld [vmem:[#allocation8 + $0x2c] sm:$0xf]
    %v308 = vld [vmem:[#allocation8 + $0x30] sm:$0xf]
    %v309 = vld [vmem:[#allocation8 + $0x34] sm:$0xf]
    %v310 = vld [vmem:[#allocation8 + $0x38] sm:$0xf]
    %v311 = vld [vmem:[#allocation8 + $0x3c] sm:$0xf]
    %v312 = vld [vmem:[%s6] sm:$0x1]
    %v314 = vperm.slane %v312, 0
    %v318 = vunpack.c.l.b16 %v194
    %v319 = vunpack.c.l.b16 %v195
    %v320 = vpack.c.b16 %v319, %v318
    %v338 = vunpack.c.l.b16 %v296
    %v339 = vunpack.c.l.b16 %v297
    %v340 = vunpack.c.l.b16 %v298
    %v341 = vunpack.c.l.b16 %v299
    %v342 = vunpack.c.l.b16 %v300
    %v343 = vunpack.c.l.b16 %v301
    %v344 = vunpack.c.l.b16 %v302
    %v345 = vunpack.c.l.b16 %v303
    %v346 = vunpack.c.l.b16 %v304
    %v347 = vunpack.c.l.b16 %v305
    %v348 = vunpack.c.l.b16 %v306
    %v349 = vunpack.c.l.b16 %v307
    %v350 = vunpack.c.l.b16 %v308
    %v351 = vunpack.c.l.b16 %v309
    %v352 = vunpack.c.l.b16 %v310
    %v353 = vunpack.c.l.b16 %v311
    %v354 = vpack.c.b16 %v339, %v338
    %v355 = vpack.c.b16 %v341, %v340
    %v356 = vpack.c.b16 %v343, %v342
    %v357 = vpack.c.b16 %v345, %v344
    %v358 = vpack.c.b16 %v347, %v346
    %v359 = vpack.c.b16 %v349, %v348
    %v360 = vpack.c.b16 %v351, %v350
    %v361 = vpack.c.b16 %v353, %v352
    %370 = vmatpush.bf16.msra.mxu0 %v361
    %371 = vmatpush.bf16.msra.mxu0 %v360
    %372 = vmatpush.bf16.msra.mxu0 %v359
    %373 = vmatpush.bf16.msra.mxu0 %v358
    %374 = vmatpush.bf16.msra.mxu0 %v357
    %375 = vmatpush.bf16.msra.mxu0 %v356
    %376 = vmatpush.bf16.msra.mxu0 %v355
    %377 = vmatpush.bf16.msra.mxu0 %v354
    %378 = vmatmul.bf16.gmra.mxu0 %v320
    %v379 = vpop.f32.mrf.mxu0
    %v380 = vadd.f32 %v314, %v379
    %v381 = vpop.f32.mrf.mxu0
    %v382 = vadd.f32 %v314, %v381
    %383 = vdwg.mxu0
    %384 = vst [vmem:[#allocation10] sm:$0xff] %v380
    %385 = vst [vmem:[#allocation10 + $0x8] sm:$0xff] %v382
    // Predicated region
    $region53: #{tpu_custom_call.1} parent=1 // pred_check
      _
    $region54: #{tpu_custom_call.1} parent=1 // pred_check_branch
      %387 = sbr.rel (0) target = $region56
    $region55: #{tpu_custom_call.1} parent=1 // pred_region
      %389 = vsyncadd [#allocation4], 0
      %s390 = sshll.u32 [#allocation10], 4
      %s391 = int_to_ptr.vmem [resolvable:$true] %s390
      %s392 = sshll.u32 %s7, 4
      %s393 = int_to_ptr.hbm [resolvable:$true] %s392
      %398 = dma.vmem_to_hbm [thread:$0]  %s391, 256, %s393, [#allocation4], 128, 128, 8
    $region56: #{tpu_custom_call.1} parent=1 // pred_fallthru
      _
    // Predicated region
    $region57: #{tpu_custom_call.1} parent=1 // pred_check
      _
    $region58: #{tpu_custom_call.1} parent=1 // pred_check_branch
      %400 = sbr.rel (0) target = $region60
    $region59: #{tpu_custom_call.1} parent=1 // pred_region
      %402 = dma.done [#allocation4], 256
    $region60: #{tpu_custom_call.1} parent=1 // pred_fallthru
      _
    %403 = vsyncpa [#allocation3], 1
    %404 = vsyncpa [#allocation6], 1
    %405 = vsyncpa [#allocation9], 1
    %406 = vsyncpa [#allocation4], 1

</llo_original>
